<compile_context>
chip_gen: v5e
topology: v5e:2x2
jax: 0.10.0
libtpu: 0.0.40
codegen_flags: <defaults>
</compile_context>

<pallas_src>
import jax
import jax.numpy as jnp
from jax import lax
from jax.experimental import pallas as pl
from jax.experimental.pallas import tpu as pltpu


_LANE = 128
_SUBLANE = 8
# Elements per (tile_n, C) block. ~0.5M f32 elements keeps double-buffered inputs
# plus compute intermediates comfortably inside VMEM on every generation (incl.
# v7x's 64 MiB) while sitting on the flat part of the tile-size/bandwidth curve.
_MAX_TILE_ELEMS = 512 * 1024
_MAX_TILE_ROWS = 1024


def _round_up(x, m):
    return ((x + m - 1) // m) * m


def _choose_tile_n(n, c):
    """Largest row tile (multiple of 8, preferably of 128) under the element cap."""
    t = max(_MAX_TILE_ELEMS // max(c, 1), _SUBLANE)
    t = min(t, _MAX_TILE_ROWS)
    if t >= _LANE:
        t = (t // _LANE) * _LANE
    else:
        t = (t // _SUBLANE) * _SUBLANE
    # Never tile more rows than the (sublane-padded) sample count.
    t = min(t, _round_up(n, _SUBLANE))
    return max(t, _SUBLANE)


def _soft_ce_kernel(x_ref, t_ref, o_ref):
    """One row block: loss_i = sum_c (-log_softmax(x)_ic * t_ic), stored lane-dense.

    x_ref, t_ref : (tile_n, C) logits / soft labels (f32 or bf16)
    o_ref        : (1, 1, tile_n) f32 per-sample losses (samples on lanes)
    """
    x = x_ref[...].astype(jnp.float32)                 # (tile_n, C)
    t = t_ref[...].astype(jnp.float32)                 # (tile_n, C)

    # Numerically stable log-sum-exp along the class axis.
    m = jnp.max(x, axis=1, keepdims=True)              # (tile_n, 1)
    lse = m + jnp.log(jnp.sum(jnp.exp(x - m), axis=1, keepdims=True))  # (tile_n, 1)

    # -log_softmax(x) = lse - x ; weight by targets in one shot.
    w = t * (lse - x)                                  # (tile_n, C)

    # Row-sum of w, produced directly in lane orientation:
    # ones(8, C) @ w^T -> (8, tile_n); the MXU slot is idle in this HBM-bound
    # kernel and this avoids a sublane->lane relayout of a loss column.
    ones = jnp.ones((_SUBLANE, w.shape[1]), jnp.float32)
    loss_rows = lax.dot_general(
        ones, w, (((1,), (1,)), ((), ())),
        preferred_element_type=jnp.float32)            # (8, tile_n), rows identical
    o_ref[...] = loss_rows[0:1, :].reshape(o_ref.shape)


def soft_cross_entropy(inputs, targets, *, reduce=True, tile_n=None):
    """Pallas implementation of softCrossEntropy.forward.

    inputs:  (N, C) logits      (f32 or bf16; bf16 halves HBM traffic)
    targets: (N, C) soft labels (f32 or bf16)
    returns: scalar mean loss (reduce=True) or (N,) per-sample losses.
    """
    n, c = inputs.shape
    assert targets.shape == (n, c)

    if tile_n is None:
        tile_n = _choose_tile_n(n, c)
    tile_n = max(_SUBLANE, (tile_n // _SUBLANE) * _SUBLANE)
    tile_n = min(tile_n, _round_up(n, _SUBLANE))

    # Pad the sample axis so it divides the row tile. Padded rows have all-zero
    # targets and therefore contribute exactly zero loss (and are sliced off).
    n_pad = _round_up(n, tile_n)
    if n_pad != n:
        pad = ((0, n_pad - n), (0, 0))
        inputs = jnp.pad(inputs, pad)
        targets = jnp.pad(targets, pad)
    num_tiles = n_pad // tile_n

    in_itemsize = max(jnp.dtype(inputs.dtype).itemsize,
                      jnp.dtype(targets.dtype).itemsize)
    # 2 inputs x 2 pipeline buffers, plus headroom for the tiny output blocks and
    # compiler scratch; capped below v7x's 64 MiB physical VMEM.
    pipeline_bytes = 2 * 2 * tile_n * c * in_itemsize
    vmem_limit = int(min(max(2 * pipeline_bytes + (8 << 20), 32 << 20), 60 << 20))

    per_tile = pl.pallas_call(
        _soft_ce_kernel,
        out_shape=jax.ShapeDtypeStruct((num_tiles, 1, tile_n), jnp.float32),
        grid_spec=pltpu.PrefetchScalarGridSpec(
            num_scalar_prefetch=0,
            grid=(num_tiles,),
            in_specs=[
                pl.BlockSpec((tile_n, c), lambda i: (i, 0)),
                pl.BlockSpec((tile_n, c), lambda i: (i, 0)),
            ],
            out_specs=pl.BlockSpec((1, 1, tile_n), lambda i: (i, 0, 0)),
        ),
        compiler_params=pltpu.CompilerParams(
            dimension_semantics=("parallel",),
            vmem_limit_bytes=vmem_limit,
        ),
    )(inputs, targets)

    per_sample = per_tile.reshape(-1)[:n]
    if reduce:
        # torch.sum(mul) / sample_num  ==  mean over samples of per-sample sums.
        return jnp.sum(per_sample) / n
    return per_sample


def _reference(inputs, targets, reduce=True):
    """Pure-JAX reference mirroring the PyTorch module."""
    log_sm = jax.nn.log_softmax(inputs.astype(jnp.float32), axis=1)
    nll = -log_sm
    tgt = targets.astype(jnp.float32)
    n = targets.shape[0]
    if reduce:
        return jnp.sum(nll * tgt) / n
    return jnp.sum(nll * tgt, axis=1)


if __name__ == "__main__":
    key = jax.random.PRNGKey(0)
    k1, k2, k3, k4 = jax.random.split(key, 4)

    # Small shapes consistent with (sample_num, class_num).
    N, C = 8, 32
    logits = jax.random.normal(k1, (N, C), dtype=jnp.float32)
    targets = jax.nn.softmax(jax.random.normal(k2, (N, C), dtype=jnp.float32), axis=1)

    loss_red = jax.block_until_ready(soft_cross_entropy(logits, targets, reduce=True))
    loss_vec = jax.block_until_ready(soft_cross_entropy(logits, targets, reduce=False))
    assert jnp.allclose(loss_red, _reference(logits, targets, True), atol=1e-4, rtol=1e-4)
    assert jnp.allclose(loss_vec, _reference(logits, targets, False), atol=1e-4, rtol=1e-4)

    # Ragged sample count (exercises zero-padding) + bf16 inputs (HBM-traffic win).
    N2, C2 = 10, 32
    logits2 = jax.random.normal(k3, (N2, C2), dtype=jnp.float32).astype(jnp.bfloat16)
    targets2 = jax.nn.softmax(
        jax.random.normal(k4, (N2, C2), dtype=jnp.float32), axis=1).astype(jnp.bfloat16)
    loss2 = jax.block_until_ready(soft_cross_entropy(logits2, targets2, reduce=False))
    ref2 = _reference(logits2, targets2, reduce=False)
    assert jnp.allclose(loss2, ref2, atol=1e-3, rtol=1e-3)

    print("KERNEL_OK")
</pallas_src>

<mosaic_0001>
module attributes {stable_mosaic.version = 11 : i64} {
  func.func @_soft_ce_kernel(%arg0: i32, %arg1: memref<8x32xf32, #tpu.memory_space<vmem>>, %arg2: memref<8x32xf32, #tpu.memory_space<vmem>>, %arg3: memref<1x1x8xf32, #tpu.memory_space<vmem>>) attributes {dimension_semantics = [#tpu.dimension_semantics<parallel>], iteration_bounds = array<i64: 1>, scalar_prefetch = 0 : i64, scratch_operands = 0 : i64, tpu.core_type = #tpu.core_type<tc>, window_params = [{transform_indices = @transform_0, window_bounds = array<i64: 8, 32>}, {transform_indices = @transform_1, window_bounds = array<i64: 8, 32>}, {transform_indices = @transform_2, window_bounds = array<i64: 1, 1, 8>}]} {
    %c0 = arith.constant 0 : index
    %c0_0 = arith.constant 0 : index
    %0 = vector.load %arg1[%c0, %c0_0] : memref<8x32xf32, #tpu.memory_space<vmem>>, vector<8x32xf32>
    %c0_1 = arith.constant 0 : index
    %c0_2 = arith.constant 0 : index
    %1 = vector.load %arg2[%c0_1, %c0_2] : memref<8x32xf32, #tpu.memory_space<vmem>>, vector<8x32xf32>
    %cst = arith.constant dense<0xFF800000> : vector<8xf32>
    %2 = vector.multi_reduction <maximumf>, %0, %cst [1] : vector<8x32xf32> to vector<8xf32>
    %3 = vector.shape_cast %2 : vector<8xf32> to vector<8x1xf32>
    %4 = vector.broadcast %3 : vector<8x1xf32> to vector<8x32xf32>
    %5 = arith.subf %0, %4 : vector<8x32xf32>
    %6 = math.exp %5 : vector<8x32xf32>
    %cst_3 = arith.constant dense<0.000000e+00> : vector<8xf32>
    %7 = vector.multi_reduction <add>, %6, %cst_3 [1] : vector<8x32xf32> to vector<8xf32>
    %8 = vector.shape_cast %7 : vector<8xf32> to vector<8x1xf32>
    %9 = math.log %8 : vector<8x1xf32>
    %10 = arith.addf %3, %9 : vector<8x1xf32>
    %11 = vector.broadcast %10 : vector<8x1xf32> to vector<8x32xf32>
    %12 = arith.subf %11, %0 : vector<8x32xf32>
    %13 = arith.mulf %1, %12 : vector<8x32xf32>
    %cst_4 = arith.constant 1.000000e+00 : f32
    %14 = vector.broadcast %cst_4 : f32 to vector<8x32xf32>
    %cst_5 = arith.constant dense<0.000000e+00> : vector<8x8xf32>
    %15 = tpu.matmul %14, %13, %cst_5 {dimension_numbers = #tpu.dot_dimension_numbers<[1], [1], [0], [0], [0, 0, 1, 0], [], []>} : vector<8x32xf32>, vector<8x32xf32>, vector<8x8xf32> -> vector<8x8xf32>
    %16 = vector.extract_strided_slice %15 {offsets = [0, 0], sizes = [1, 8], strides = [1, 1]} : vector<8x8xf32> to vector<1x8xf32>
    %17 = vector.shape_cast %16 : vector<1x8xf32> to vector<1x1x8xf32>
    %c0_6 = arith.constant 0 : index
    %c0_7 = arith.constant 0 : index
    %c0_8 = arith.constant 0 : index
    %18 = vector.load %arg3[%c0_6, %c0_7, %c0_8] : memref<1x1x8xf32, #tpu.memory_space<vmem>>, vector<1x1x8xf32>
    tpu.vector_store %arg3[%c0_6, %c0_7, %c0_8], %17 {strides = array<i32>} : memref<1x1x8xf32, #tpu.memory_space<vmem>>, vector<1x1x8xf32>,
    return
  }
  func.func @transform_0(%arg0: i32) -> (i32, i32) {
    %c0_i32 = arith.constant 0 : i32
    %c0_i32_0 = arith.constant 0 : i32
    return %arg0, %c0_i32 : i32, i32
  }
  func.func @transform_1(%arg0: i32) -> (i32, i32) {
    %c0_i32 = arith.constant 0 : i32
    %c0_i32_0 = arith.constant 0 : i32
    return %arg0, %c0_i32 : i32, i32
  }
  func.func @transform_2(%arg0: i32) -> (i32, i32, i32) {
    %c0_i32 = arith.constant 0 : i32
    %c0_i32_0 = arith.constant 0 : i32
    %c0_i32_1 = arith.constant 0 : i32
    return %arg0, %c0_i32, %c0_i32_0 : i32, i32, i32
  }
}

</mosaic_0001>

<llo_original>
// kernel: tpu_custom_call.1
$region0: #{tpu_custom_call.1}
  #allocation0 [shape = 'u32[]', space=smem, size = 0x4, offset = 0x4, fixed_abs, tag = 'smem constant byte address 0x4 - core index']
  #allocation1 [shape = 'u32[72,128]{1,0:T(1,128)}', space=vmem, size = 0x9000, scoped, tag = 'internal scratch']
  %s0 = inlined_call_operand.hbm [shape: f32[8,32], index: 0, kind: input, shape index: {}]
  %s1 = inlined_call_operand.hbm [shape: f32[8,32], index: 1, kind: input, shape index: {}]
  %s2 = inlined_call_operand.hbm [shape: f32[1,1,8], index: 2, kind: output, shape index: {}]
  %s3 = sld [smem:[#allocation0]]
  $region26: #{tpu_custom_call.1} parent=0
    _
  %s5 = ssub.s32 1, %s3
  %s6 = scalar_select 0, %s5, %s3
  $region1: #{tpu_custom_call.1} parent=0
    #allocation2 [shape = 'u8[4096]{0}', space=vmem, size = 0x1000, scoped, tag = 'input window, operand 0, single buffered']
    #allocation3 [shape = 's32[1]{0}', space=sflag, size = 0x4, scoped, tag = 'scoped memory for tpu_custom_call.1']
    #allocation4 [shape = 's32[1]{0}', space=sflag, size = 0x4, scoped, tag = 'scoped memory for tpu_custom_call.1']
    #allocation5 [shape = 'u8[4096]{0}', space=vmem, size = 0x1000, scoped, tag = 'input window, operand 1, single buffered']
    #allocation6 [shape = 's32[1]{0}', space=sflag, size = 0x4, scoped, tag = 'scoped memory for tpu_custom_call.1']
    #allocation7 [shape = 'u8[512]{0}', space=vmem, size = 0x400, scoped, tag = 'output window, operand 0, single buffered']
    %7 = vsyncpa [#allocation3], 0
    %8 = vsyncpa [#allocation6], 0
    %9 = vsyncpa [#allocation4], 0
    // Predicated region
    $region2: #{tpu_custom_call.1} parent=1 // pred_check
      _
    $region3: #{tpu_custom_call.1} parent=1 // pred_check_branch
      %11 = sbr.rel (0) target = $region5
    $region4: #{tpu_custom_call.1} parent=1 // pred_region
      %13 = vsyncadd [#allocation3], 0
      %s15 = sshll.u32 %s0, 4
      %s16 = int_to_ptr.hbm [resolvable:$true] %s15
      %s17 = sshll.u32 [#allocation2], 4
      %s18 = int_to_ptr.vmem [resolvable:$true] %s17
      %20 = dma.hbm_to_vmem [thread:$0]  %s16, 128, %s18, [#allocation3]
    $region5: #{tpu_custom_call.1} parent=1 // pred_fallthru
      _
    // Predicated region
    $region6: #{tpu_custom_call.1} parent=1 // pred_check
      _
    $region7: #{tpu_custom_call.1} parent=1 // pred_check_branch
      %22 = sbr.rel (0) target = $region9
    $region8: #{tpu_custom_call.1} parent=1 // pred_region
      %24 = vsyncadd [#allocation6], 0
      %s26 = sshll.u32 %s1, 4
      %s27 = int_to_ptr.hbm [resolvable:$true] %s26
      %s28 = sshll.u32 [#allocation5], 4
      %s29 = int_to_ptr.vmem [resolvable:$true] %s28
      %31 = dma.hbm_to_vmem [thread:$0]  %s27, 128, %s29, [#allocation6]
    $region9: #{tpu_custom_call.1} parent=1 // pred_fallthru
      _
    // Predicated region
    $region10: #{tpu_custom_call.1} parent=1 // pred_check
      _
    $region11: #{tpu_custom_call.1} parent=1 // pred_check_branch
      %33 = sbr.rel (0) target = $region13
    $region12: #{tpu_custom_call.1} parent=1 // pred_region
      %35 = dma.done [#allocation3], 128
    $region13: #{tpu_custom_call.1} parent=1 // pred_fallthru
      _
    // Predicated region
    $region14: #{tpu_custom_call.1} parent=1 // pred_check
      _
    $region15: #{tpu_custom_call.1} parent=1 // pred_check_branch
      %37 = sbr.rel (0) target = $region17
    $region16: #{tpu_custom_call.1} parent=1 // pred_region
      %39 = dma.done [#allocation6], 128
    $region17: #{tpu_custom_call.1} parent=1 // pred_fallthru
      _
    %v40 = vld [vmem:[#allocation2] sm:$0xff]
    %v41 = vld [vmem:[#allocation5] sm:$0xff]
    %vm42 = vcmask 261120
    %v43 = vsel %vm42, %v40, -inf
    %44 = vmax.xlane.f32.xlu0 %v43
    %v45 = vpop.xlane.xlu0 %44
    %v46 = vsub.f32 %v40, %v45
    %v47 = vmul.f32 %v46, 1.442695
    %v48 = vpow.pop %v47
    %v49 = vsel %vm42, %v48, 0.0
    %50 = vadd.xlane.f32.xlu0 %v49
    %v51 = vpop.xlane.xlu0 %50
    %v52 = vlog2.pop %v51
    %v53 = vmul.f32 %v52, 0.6931472
    %v54 = vadd.f32 %v45, %v53
    %v55 = vsub.f32 %v54, %v40
    %v56 = vmul.f32 %v41, %v55
    %v58 = vsel %vm42, 1.0, 0
    %v61 = vsel %vm42, %v56, 0
    %63 = vmatpush.xpose.msra.mxu0 0.0
    %64 = vmatpush.xpose.msra.mxu0 0.0
    %65 = vmatpush.xpose.msra.mxu0 0.0
    %66 = vmatpush.xpose.msra.mxu0 0.0
    %67 = vmatpush.xpose.msra.mxu0 0.0
    %68 = vmatpush.xpose.msra.mxu0 0.0
    %69 = vmatpush.xpose.msra.mxu0 0.0
    %70 = vmatpush.xpose.msra.mxu0 0.0
    %71 = vmatpush.xpose.msra.mxu0 0.0
    %72 = vmatpush.xpose.msra.mxu0 0.0
    %73 = vmatpush.xpose.msra.mxu0 0.0
    %74 = vmatpush.xpose.msra.mxu0 0.0
    %75 = vmatpush.xpose.msra.mxu0 0.0
    %76 = vmatpush.xpose.msra.mxu0 0.0
    %77 = vmatpush.xpose.msra.mxu0 0.0
    %78 = vmatpush.xpose.msra.mxu0 %v61
    %79 = vmatmul.f32.gmra.mxu0 %v58
    %v80 = vpop.f32.mrf.mxu0
    %v81 = vadd.f32 0.0, %v80
    %82 = vdwg.mxu0
    %vm83 = vcmask 57344
    %84 = vst.msk [vmem:[#allocation7] sm:$0x1] %vm83, %v81
    // Predicated region
    $region18: #{tpu_custom_call.1} parent=1 // pred_check
      _
    $region19: #{tpu_custom_call.1} parent=1 // pred_check_branch
      %86 = sbr.rel (0) target = $region21
    $region20: #{tpu_custom_call.1} parent=1 // pred_region
      %88 = vsyncadd [#allocation4], 0
      %s90 = sshll.u32 [#allocation7], 4
      %s91 = int_to_ptr.vmem [resolvable:$true] %s90
      %s92 = sshll.u32 %s2, 4
      %s93 = int_to_ptr.hbm [resolvable:$true] %s92
      %95 = dma.vmem_to_hbm [thread:$0]  %s91, 16, %s93, [#allocation4]
    $region21: #{tpu_custom_call.1} parent=1 // pred_fallthru
      _
    // Predicated region
    $region22: #{tpu_custom_call.1} parent=1 // pred_check
      _
    $region23: #{tpu_custom_call.1} parent=1 // pred_check_branch
      %97 = sbr.rel (0) target = $region25
    $region24: #{tpu_custom_call.1} parent=1 // pred_region
      %99 = dma.done [#allocation4], 16
    $region25: #{tpu_custom_call.1} parent=1 // pred_fallthru
      _
    %100 = vsyncpa [#allocation3], 1
    %101 = vsyncpa [#allocation6], 1
    %102 = vsyncpa [#allocation4], 1

</llo_original>
